<compile_context>
chip_gen: v6e
topology: v6e:2x2x1
jax: 0.10.0
libtpu: 0.0.40
codegen_flags: <defaults>
</compile_context>

<pallas_src>
import functools

import jax
import jax.numpy as jnp
from jax.experimental import pallas as pl
from jax.experimental.pallas import tpu as pltpu

LANE = 128                 # lane width  (last dim of a vreg tile)
SUBLANE = 8                # sublane width (second-to-last dim)
GRIDLESS_MAX_ROWS = 1024   # cap for the un-pipelined single-invocation path


def _round_up(n, m):
    return -(-n // m) * m


# ---------------------------------------------------------------------------
# Fused kernel: the whole MLP in one body.
# refs = (x_ref, w0, b0, w1, b1, ..., w_{L-1}, b_{L-1}, o_ref)
#   x_ref : [TB, F]            (f32, real feature width)
#   w_l   : [in_l, out_l]      (pre-transposed from torch [out, in]; hidden
#                               dims padded to 128 lanes, first-in / last-out
#                               kept at their real widths; bf16 by default)
#   b_l   : [1, out_l]         (f32)
#   o_ref : [TB, num_classes]  (f32)
# Intermediate activations are ordinary traced values -> they live in
# vregs/VMEM; no HBM traffic between layers.
# ---------------------------------------------------------------------------
def _fused_mlp_kernel(*refs, n_layers):
    x_ref, o_ref = refs[0], refs[-1]
    p = refs[1:-1]
    h = x_ref[...].astype(jnp.float32)
    for l in range(n_layers):
        w = p[2 * l][...]
        b = p[2 * l + 1][...]
        y = jnp.dot(h.astype(w.dtype), w,
                    preferred_element_type=jnp.float32) + b    # MXU, f32 acc
        if l < n_layers - 1:
            h = jnp.maximum(y, 0.0)        # ReLU    (VPU, f32)
        else:
            h = jax.nn.sigmoid(y)          # Sigmoid (EUP exp, f32)
    o_ref[...] = h.astype(o_ref.dtype)


# ---------------------------------------------------------------------------
# Parameter construction (PyTorch nn.Linear-style init).  All layout work
# (transpose to [in, out], pad hidden dims to 128 lanes) is done ONCE here.
# First layer keeps its real input width and the last layer its real output
# width, so x and the output need no lane padding on the forward path.
# ---------------------------------------------------------------------------
def init_params(key, num_features, num_classes, num_hidden_layers,
                hidden_neurons, weight_dtype=jnp.bfloat16,
                bias_dtype=jnp.float32):
    dims = [num_features] + [hidden_neurons] * num_hidden_layers + [num_classes]
    n_linear = len(dims) - 1
    params = []
    for i in range(n_linear):
        fan_in, fan_out = dims[i], dims[i + 1]
        in_store = fan_in if i == 0 else _round_up(fan_in, LANE)
        out_store = fan_out if i == n_linear - 1 else _round_up(fan_out, LANE)
        key, kw, kb = jax.random.split(key, 3)
        bound = 1.0 / (fan_in ** 0.5)
        w = jax.random.uniform(kw, (fan_out, fan_in), jnp.float32,
                               minval=-bound, maxval=bound)   # torch [out, in]
        b = jax.random.uniform(kb, (fan_out,), jnp.float32,
                               minval=-bound, maxval=bound)
        w_t = (jnp.zeros((in_store, out_store), jnp.float32)
               .at[:fan_in, :fan_out].set(w.T)
               .astype(weight_dtype))
        b_p = (jnp.zeros((1, out_store), bias_dtype)
               .at[0, :fan_out].set(b.astype(bias_dtype)))
        params.append((w_t, b_p))
    return params


# ---------------------------------------------------------------------------
# Forward pass (matches FixedNeuronsNetwork.forward)
# ---------------------------------------------------------------------------
def fixed_neurons_network_forward(params, x, num_classes, *, batch_tile=512):
    B, F = x.shape
    n_layers = len(params)
    flat_params = [a for wb in params for a in wb]
    assert params[0][0].shape[0] == F, "layer-0 weight must match num_features"
    C = params[-1][0].shape[1]
    assert C == num_classes
    hidden_pad = max(w.shape[1] for w, _ in params)

    # Only per-forward layout work: pad the batch to a sublane multiple.
    B_pad = _round_up(B, SUBLANE)
    x_pad = x if B_pad == B else jnp.pad(x, ((0, B_pad - B), (0, 0)))

    batch_tile = max(SUBLANE, _round_up(min(batch_tile, B_pad), SUBLANE))

    # Explicit VMEM budget: resident params + double-buffered x/out streams +
    # in-flight activations (keeps us honest on v7x's 64 MiB physical VMEM).
    param_bytes = sum(int(p.size) * p.dtype.itemsize for p in flat_params)
    stream_bytes = 2 * batch_tile * (F + C) * 4
    act_bytes = 4 * batch_tile * hidden_pad * 4
    vmem_limit = int(min(max(2 * (param_bytes + stream_bytes + act_bytes),
                             16 * 1024 * 1024), 60 * 1024 * 1024))

    kernel = functools.partial(_fused_mlp_kernel, n_layers=n_layers)
    out_shape = jax.ShapeDtypeStruct((B_pad, C), jnp.float32)

    if B_pad <= batch_tile and B_pad <= GRIDLESS_MAX_ROWS:
        # Small batch: single gridless invocation, everything VMEM-resident.
        n_in = 1 + len(flat_params)
        out_pad = pl.pallas_call(
            kernel,
            out_shape=out_shape,
            in_specs=[pl.BlockSpec(memory_space=pltpu.MemorySpace.VMEM)
                      for _ in range(n_in)],
            out_specs=pl.BlockSpec(memory_space=pltpu.MemorySpace.VMEM),
            compiler_params=pltpu.CompilerParams(vmem_limit_bytes=vmem_limit),
        )(x_pad, *flat_params)
    else:
        # Streaming batch-tiled grid; cdiv grid with a masked partial last
        # tile instead of rounding B up to a tile multiple.
        n_btiles = pl.cdiv(B_pad, batch_tile)
        if n_btiles == 1 or n_btiles % 2 == 1:
            # Keep the tile count >= 2 and even so v7x's two TensorCores stay
            # balanced (best effort; near-neutral on single-TC v5e/v6e).
            batch_tile = _round_up(pl.cdiv(B_pad, n_btiles + 1), SUBLANE)
            n_btiles = pl.cdiv(B_pad, batch_tile)

        in_specs = [pl.BlockSpec((batch_tile, F), lambda i: (i, 0))]
        for p in flat_params:
            # Constant index_map -> weights/biases stay VMEM-resident; they
            # are never re-DMA'd across batch tiles.
            in_specs.append(pl.BlockSpec(p.shape, lambda i: (0, 0)))

        out_pad = pl.pallas_call(
            kernel,
            out_shape=out_shape,
            grid=(n_btiles,),
            in_specs=in_specs,
            out_specs=pl.BlockSpec((batch_tile, C), lambda i: (i, 0)),
            compiler_params=pltpu.CompilerParams(
                dimension_semantics=("parallel",),
                vmem_limit_bytes=vmem_limit),
        )(x_pad, *flat_params)

    return out_pad[:B]


# ---------------------------------------------------------------------------
# Pure-JAX reference with the same math as the kernel (bf16 MXU operands,
# f32 accumulation / elementwise) for the correctness check.
# ---------------------------------------------------------------------------
def reference_forward(params, x, num_classes):
    h = x.astype(jnp.float32)
    for i, (w, b) in enumerate(params):
        y = jnp.dot(h.astype(w.dtype), w,
                    preferred_element_type=jnp.float32) + b
        h = jnp.maximum(y, 0.0) if i < len(params) - 1 else jax.nn.sigmoid(y)
    return h[:, :num_classes]


# ---------------------------------------------------------------------------
if __name__ == "__main__":
    batch = 8
    num_features = 16
    num_classes = 4
    num_hidden_layers = 3
    hidden_neurons = 32

    key = jax.random.PRNGKey(0)
    key, kx = jax.random.split(key)
    x = jax.random.normal(kx, (batch, num_features), jnp.float32)

    params = init_params(key, num_features, num_classes,
                         num_hidden_layers, hidden_neurons)

    # Small batch: gridless single fused invocation.
    out = jax.block_until_ready(
        fixed_neurons_network_forward(params, x, num_classes))
    ref = reference_forward(params, x, num_classes)

    assert out.shape == (batch, num_classes)
    assert bool(jnp.all(jnp.isfinite(out)))
    assert bool(jnp.all((out >= 0.0) & (out <= 1.0)))
    assert bool(jnp.allclose(out, ref, rtol=2e-2, atol=2e-2))

    # Larger batch that is NOT a tile multiple: exercises the batch-tiled
    # "parallel" grid path with an even tile count and a partial last tile.
    key, kx2 = jax.random.split(key)
    x_big = jax.random.normal(kx2, (300, num_features), jnp.float32)
    out_big = jax.block_until_ready(
        fixed_neurons_network_forward(params, x_big, num_classes,
                                      batch_tile=128))
    ref_big = reference_forward(params, x_big, num_classes)
    assert out_big.shape == (300, num_classes)
    assert bool(jnp.all(jnp.isfinite(out_big)))
    assert bool(jnp.allclose(out_big, ref_big, rtol=2e-2, atol=2e-2))

    print("KERNEL_OK")
</pallas_src>

<mosaic_0001>
module attributes {stable_mosaic.version = 11 : i64} {
  func.func @_fused_mlp_kernel(%arg0: memref<8x16xf32, #tpu.memory_space<vmem>>, %arg1: memref<16x128xbf16, #tpu.memory_space<vmem>>, %arg2: memref<1x128xf32, #tpu.memory_space<vmem>>, %arg3: memref<128x128xbf16, #tpu.memory_space<vmem>>, %arg4: memref<1x128xf32, #tpu.memory_space<vmem>>, %arg5: memref<128x128xbf16, #tpu.memory_space<vmem>>, %arg6: memref<1x128xf32, #tpu.memory_space<vmem>>, %arg7: memref<128x4xbf16, #tpu.memory_space<vmem>>, %arg8: memref<1x4xf32, #tpu.memory_space<vmem>>, %arg9: memref<8x4xf32, #tpu.memory_space<vmem>>) attributes {dimension_semantics = [], scalar_prefetch = 0 : i64, scratch_operands = 0 : i64, tpu.core_type = #tpu.core_type<tc>} {
    %c0 = arith.constant 0 : index
    %c0_0 = arith.constant 0 : index
    %0 = vector.load %arg0[%c0, %c0_0] : memref<8x16xf32, #tpu.memory_space<vmem>>, vector<8x16xf32>
    %c0_1 = arith.constant 0 : index
    %c0_2 = arith.constant 0 : index
    %1 = vector.load %arg1[%c0_1, %c0_2] : memref<16x128xbf16, #tpu.memory_space<vmem>>, vector<16x128xbf16>
    %c0_3 = arith.constant 0 : index
    %c0_4 = arith.constant 0 : index
    %2 = vector.load %arg2[%c0_3, %c0_4] : memref<1x128xf32, #tpu.memory_space<vmem>>, vector<1x128xf32>
    %3 = arith.truncf %0 : vector<8x16xf32> to vector<8x16xbf16>
    %cst = arith.constant dense<0.000000e+00> : vector<8x128xf32>
    %4 = tpu.matmul %3, %1, %cst {dimension_numbers = #tpu.dot_dimension_numbers<[1], [0], [0], [1], [0, 0, 1, 1], [], []>} : vector<8x16xbf16>, vector<16x128xbf16>, vector<8x128xf32> -> vector<8x128xf32>
    %5 = vector.broadcast %2 : vector<1x128xf32> to vector<8x128xf32>
    %6 = arith.addf %4, %5 : vector<8x128xf32>
    %cst_5 = arith.constant 0.000000e+00 : f32
    %7 = vector.broadcast %cst_5 : f32 to vector<8x128xf32>
    %8 = arith.maximumf %6, %7 : vector<8x128xf32>
    %c0_6 = arith.constant 0 : index
    %c0_7 = arith.constant 0 : index
    %9 = vector.load %arg3[%c0_6, %c0_7] : memref<128x128xbf16, #tpu.memory_space<vmem>>, vector<128x128xbf16>
    %c0_8 = arith.constant 0 : index
    %c0_9 = arith.constant 0 : index
    %10 = vector.load %arg4[%c0_8, %c0_9] : memref<1x128xf32, #tpu.memory_space<vmem>>, vector<1x128xf32>
    %11 = arith.truncf %8 : vector<8x128xf32> to vector<8x128xbf16>
    %cst_10 = arith.constant dense<0.000000e+00> : vector<8x128xf32>
    %12 = tpu.matmul %11, %9, %cst_10 {dimension_numbers = #tpu.dot_dimension_numbers<[1], [0], [0], [1], [0, 0, 1, 1], [], []>} : vector<8x128xbf16>, vector<128x128xbf16>, vector<8x128xf32> -> vector<8x128xf32>
    %13 = vector.broadcast %10 : vector<1x128xf32> to vector<8x128xf32>
    %14 = arith.addf %12, %13 : vector<8x128xf32>
    %cst_11 = arith.constant 0.000000e+00 : f32
    %15 = vector.broadcast %cst_11 : f32 to vector<8x128xf32>
    %16 = arith.maximumf %14, %15 : vector<8x128xf32>
    %c0_12 = arith.constant 0 : index
    %c0_13 = arith.constant 0 : index
    %17 = vector.load %arg5[%c0_12, %c0_13] : memref<128x128xbf16, #tpu.memory_space<vmem>>, vector<128x128xbf16>
    %c0_14 = arith.constant 0 : index
    %c0_15 = arith.constant 0 : index
    %18 = vector.load %arg6[%c0_14, %c0_15] : memref<1x128xf32, #tpu.memory_space<vmem>>, vector<1x128xf32>
    %19 = arith.truncf %16 : vector<8x128xf32> to vector<8x128xbf16>
    %cst_16 = arith.constant dense<0.000000e+00> : vector<8x128xf32>
    %20 = tpu.matmul %19, %17, %cst_16 {dimension_numbers = #tpu.dot_dimension_numbers<[1], [0], [0], [1], [0, 0, 1, 1], [], []>} : vector<8x128xbf16>, vector<128x128xbf16>, vector<8x128xf32> -> vector<8x128xf32>
    %21 = vector.broadcast %18 : vector<1x128xf32> to vector<8x128xf32>
    %22 = arith.addf %20, %21 : vector<8x128xf32>
    %cst_17 = arith.constant 0.000000e+00 : f32
    %23 = vector.broadcast %cst_17 : f32 to vector<8x128xf32>
    %24 = arith.maximumf %22, %23 : vector<8x128xf32>
    %c0_18 = arith.constant 0 : index
    %c0_19 = arith.constant 0 : index
    %25 = vector.load %arg7[%c0_18, %c0_19] : memref<128x4xbf16, #tpu.memory_space<vmem>>, vector<128x4xbf16>
    %c0_20 = arith.constant 0 : index
    %c0_21 = arith.constant 0 : index
    %26 = vector.load %arg8[%c0_20, %c0_21] : memref<1x4xf32, #tpu.memory_space<vmem>>, vector<1x4xf32>
    %27 = arith.truncf %24 : vector<8x128xf32> to vector<8x128xbf16>
    %cst_22 = arith.constant dense<0.000000e+00> : vector<8x4xf32>
    %28 = tpu.matmul %27, %25, %cst_22 {dimension_numbers = #tpu.dot_dimension_numbers<[1], [0], [0], [1], [0, 0, 1, 1], [], []>} : vector<8x128xbf16>, vector<128x4xbf16>, vector<8x4xf32> -> vector<8x4xf32>
    %29 = vector.broadcast %26 : vector<1x4xf32> to vector<8x4xf32>
    %30 = arith.addf %28, %29 : vector<8x4xf32>
    %31 = arith.negf %30 : vector<8x4xf32>
    %32 = math.exp %31 : vector<8x4xf32>
    %cst_23 = arith.constant 1.000000e+00 : f32
    %33 = vector.broadcast %cst_23 : f32 to vector<8x4xf32>
    %34 = arith.addf %33, %32 : vector<8x4xf32>
    %35 = arith.divf %33, %34 : vector<8x4xf32>
    %c0_24 = arith.constant 0 : index
    %c0_25 = arith.constant 0 : index
    %36 = vector.load %arg9[%c0_24, %c0_25] : memref<8x4xf32, #tpu.memory_space<vmem>>, vector<8x4xf32>
    tpu.vector_store %arg9[%c0_24, %c0_25], %35 {strides = array<i32>} : memref<8x4xf32, #tpu.memory_space<vmem>>, vector<8x4xf32>,
    return
  }
}

</mosaic_0001>

<llo_original>
// kernel: tpu_custom_call.1
$region0: #{tpu_custom_call.1}
  #allocation0 [shape = 'u32[]', space=smem, size = 0x4, offset = 0x4, fixed_abs, tag = 'smem constant byte address 0x4 - core index']
  #allocation1 [shape = 'u32[144,128]{1,0:T(1,128)}', space=vmem, size = 0x12000, scoped, tag = 'internal scratch']
  %s0 = inlined_call_operand.hbm [shape: f32[8,16], index: 0, kind: input, shape index: {}]
  %s1 = inlined_call_operand.hbm [shape: bf16[16,128], index: 1, kind: input, shape index: {}]
  %s2 = inlined_call_operand.vmem [shape: f32[1,128], index: 2, kind: input, shape index: {}]
  %s3 = inlined_call_operand.vmem [shape: bf16[128,128], index: 3, kind: input, shape index: {}]
  %s4 = inlined_call_operand.vmem [shape: f32[1,128], index: 4, kind: input, shape index: {}]
  %s5 = inlined_call_operand.hbm [shape: bf16[128,128], index: 5, kind: input, shape index: {}]
  %s6 = inlined_call_operand.vmem [shape: f32[1,128], index: 6, kind: input, shape index: {}]
  %s7 = inlined_call_operand.vmem [shape: bf16[128,4], index: 7, kind: input, shape index: {}]
  %s8 = inlined_call_operand.vmem [shape: f32[1,4], index: 8, kind: input, shape index: {}]
  %s9 = inlined_call_operand.vmem [shape: f32[8,4], index: 9, kind: output, shape index: {}]
  %s10 = sld [smem:[#allocation0]]
  $region58: #{tpu_custom_call.1} parent=0
    _
  %s12 = ssub.s32 1, %s10
  %s13 = scalar_select 0, %s12, %s10
  $region1: #{tpu_custom_call.1} parent=0
    #allocation2 [shape = 'u8[4096]{0}', space=vmem, size = 0x1000, scoped, tag = 'input window, operand 0, single buffered']
    #allocation3 [shape = 's32[1]{0}', space=sflag, size = 0x4, scoped, tag = 'scoped memory for tpu_custom_call.1']
    #allocation4 [shape = 'u8[4096]{0}', space=vmem, size = 0x1000, scoped, tag = 'input window, operand 1, single buffered']
    #allocation5 [shape = 's32[1]{0}', space=sflag, size = 0x4, scoped, tag = 'scoped memory for tpu_custom_call.1']
    #allocation6 [shape = 'u8[32768]{0}', space=vmem, size = 0x8000, scoped, tag = 'input window, operand 5, single buffered']
    %14 = vsyncpa [#allocation3], 0
    %15 = vsyncpa [#allocation5], 0
    // Predicated region
    $region2: #{tpu_custom_call.1} parent=1 // pred_check
      _
    $region3: #{tpu_custom_call.1} parent=1 // pred_check_branch
      %17 = sbr.rel (0) target = $region5
    $region4: #{tpu_custom_call.1} parent=1 // pred_region
      %s19 = ssub.s32 128, 128
      %20 = vsyncadd [#allocation3], %s19
      %s22 = sshll.u32 [#allocation2], 4
      %s23 = int_to_ptr.vmem [resolvable:$true] %s22
      %25 = dma.hbm_to_vmem [thread:$0]  %s0, 128, %s23, [#allocation3]
    $region5: #{tpu_custom_call.1} parent=1 // pred_fallthru
      _
    // Predicated region
    $region6: #{tpu_custom_call.1} parent=1 // pred_check
      _
    $region7: #{tpu_custom_call.1} parent=1 // pred_check_branch
      %27 = sbr.rel (0) target = $region9
    $region8: #{tpu_custom_call.1} parent=1 // pred_region
      %s29 = ssub.s32 128, 128
      %30 = vsyncadd [#allocation5], %s29
      %s31 = sshll.u32 [#allocation4], 4
      %s32 = int_to_ptr.vmem [resolvable:$true] %s31
      %37 = dma.hbm_to_vmem [thread:$0]  %s1, 128, %s32, [#allocation5], 64, 64, 4
    $region9: #{tpu_custom_call.1} parent=1 // pred_fallthru
      _
    // Predicated region
    $region10: #{tpu_custom_call.1} parent=1 // pred_check
      _
    $region11: #{tpu_custom_call.1} parent=1 // pred_check_branch
      %39 = sbr.rel (0) target = $region13
    $region12: #{tpu_custom_call.1} parent=1 // pred_region
      _
    $region13: #{tpu_custom_call.1} parent=1 // pred_fallthru
      _
    // Predicated region
    $region14: #{tpu_custom_call.1} parent=1 // pred_check
      _
    $region15: #{tpu_custom_call.1} parent=1 // pred_check_branch
      %41 = sbr.rel (0) target = $region17
    $region16: #{tpu_custom_call.1} parent=1 // pred_region
      _
    $region17: #{tpu_custom_call.1} parent=1 // pred_fallthru
      _
    // Predicated region
    $region18: #{tpu_custom_call.1} parent=1 // pred_check
      _
    $region19: #{tpu_custom_call.1} parent=1 // pred_check_branch
      %43 = sbr.rel (0) target = $region21
    $region20: #{tpu_custom_call.1} parent=1 // pred_region
      _
    $region21: #{tpu_custom_call.1} parent=1 // pred_fallthru
      _
    // Predicated region
    $region22: #{tpu_custom_call.1} parent=1 // pred_check
      _
    $region23: #{tpu_custom_call.1} parent=1 // pred_check_branch
      %45 = sbr.rel (0) target = $region25
    $region24: #{tpu_custom_call.1} parent=1 // pred_region
      %s47 = ssub.s32 1024, 1024
      %48 = vsyncadd [#allocation5], %s47
      %s49 = sshll.u32 [#allocation6], 4
      %s50 = int_to_ptr.vmem [resolvable:$true] %s49
      %55 = dma.hbm_to_vmem [thread:$0]  %s5, 1024, %s50, [#allocation5], 64, 64, 4
    $region25: #{tpu_custom_call.1} parent=1 // pred_fallthru
      _
    // Predicated region
    $region26: #{tpu_custom_call.1} parent=1 // pred_check
      _
    $region27: #{tpu_custom_call.1} parent=1 // pred_check_branch
      %57 = sbr.rel (0) target = $region29
    $region28: #{tpu_custom_call.1} parent=1 // pred_region
      _
    $region29: #{tpu_custom_call.1} parent=1 // pred_fallthru
      _
    // Predicated region
    $region30: #{tpu_custom_call.1} parent=1 // pred_check
      _
    $region31: #{tpu_custom_call.1} parent=1 // pred_check_branch
      %59 = sbr.rel (0) target = $region33
    $region32: #{tpu_custom_call.1} parent=1 // pred_region
      _
    $region33: #{tpu_custom_call.1} parent=1 // pred_fallthru
      _
    // Predicated region
    $region34: #{tpu_custom_call.1} parent=1 // pred_check
      _
    $region35: #{tpu_custom_call.1} parent=1 // pred_check_branch
      %61 = sbr.rel (0) target = $region37
    $region36: #{tpu_custom_call.1} parent=1 // pred_region
      _
    $region37: #{tpu_custom_call.1} parent=1 // pred_fallthru
      _
    // Predicated region
    $region38: #{tpu_custom_call.1} parent=1 // pred_check
      _
    $region39: #{tpu_custom_call.1} parent=1 // pred_check_branch
      %63 = sbr.rel (0) target = $region41
    $region40: #{tpu_custom_call.1} parent=1 // pred_region
      %64 = dma.done [#allocation3], 128
    $region41: #{tpu_custom_call.1} parent=1 // pred_fallthru
      _
    // Predicated region
    $region42: #{tpu_custom_call.1} parent=1 // pred_check
      _
    $region43: #{tpu_custom_call.1} parent=1 // pred_check_branch
      %66 = sbr.rel (0) target = $region45
    $region44: #{tpu_custom_call.1} parent=1 // pred_region
      %67 = dma.done [#allocation5], 128
    $region45: #{tpu_custom_call.1} parent=1 // pred_fallthru
      _
    // Predicated region
    $region46: #{tpu_custom_call.1} parent=1 // pred_check
      _
    $region47: #{tpu_custom_call.1} parent=1 // pred_check_branch
      %69 = sbr.rel (0) target = $region49
    $region48: #{tpu_custom_call.1} parent=1 // pred_region
      %70 = dma.done [#allocation5], 1024
    $region49: #{tpu_custom_call.1} parent=1 // pred_fallthru
      _
    %v72 = vld [vmem:[#allocation2] sm:$0xff]
    %v73 = vld [vmem:[#allocation4] sm:$0xf]
    %v74 = vld [vmem:[#allocation4 + $0x4] sm:$0xf]
    %v75 = vld [vmem:[%s2] sm:$0x1]
    %v76 = vpack.c.bf16 %v72, %v72
    %v78 = vlaneseq
    %v79 = vshrl.u32 %v78, 7
    %v80 = vsub.s32 0, %v79
    %v81 = vrot.slane %v75, %v80
    %v85 = vunpack.c.l.b16 %v73
    %v86 = vunpack.c.l.b16 %v74
    %v87 = vpack.c.b16 %v86, %v85
    %vm89 = vcmask 130048
    %v91 = vsel %vm89, %v76, 0
    %93 = vmatprep.subr.bf16.mxu0 0
    %94 = vmatpush1.bf16.msra.mxu0 0
    %95 = vmatprep.subr.bf16.mxu0 0
    %96 = vmatpush1.bf16.msra.mxu0 0
    %97 = vmatprep.subr.bf16.mxu0 0
    %98 = vmatpush1.bf16.msra.mxu0 0
    %99 = vmatprep.subr.bf16.mxu0 0
    %100 = vmatpush1.bf16.msra.mxu0 0
    %101 = vmatprep.subr.bf16.mxu0 0
    %102 = vmatpush1.bf16.msra.mxu0 0
    %103 = vmatprep.subr.bf16.mxu0 0
    %104 = vmatpush1.bf16.msra.mxu0 0
    %105 = vmatprep.subr.bf16.mxu0 0
    %106 = vmatpush1.bf16.msra.mxu0 0
    %107 = vmatprep.subr.bf16.mxu0 0
    %108 = vmatpush1.bf16.msra.mxu0 %v87
    %109 = vmatprep.subr.bf16.mxu0 0
    %110 = vmatpush2.bf16.msra.mxu0 0
    %111 = vmatprep.subr.bf16.mxu0 0
    %112 = vmatpush2.bf16.msra.mxu0 0
    %113 = vmatprep.subr.bf16.mxu0 0
    %114 = vmatpush2.bf16.msra.mxu0 0
    %115 = vmatprep.subr.bf16.mxu0 0
    %116 = vmatpush2.bf16.msra.mxu0 0
    %117 = vmatprep.subr.bf16.mxu0 0
    %118 = vmatpush2.bf16.msra.mxu0 0
    %119 = vmatprep.subr.bf16.mxu0 0
    %120 = vmatpush2.bf16.msra.mxu0 0
    %121 = vmatprep.subr.bf16.mxu0 0
    %122 = vmatpush2.bf16.msra.mxu0 0
    %123 = vmatprep.subr.bf16.mxu0 0
    %124 = vmatpush2.bf16.msra.mxu0 0
    %125 = vmatprep.mubr.bf16.mxu0 0
    %126 = vmatmul.mubr.bf16.gmra.mxu0 %v91
    %v127 = vpop.f32.mrf.mxu0
    %v128 = vadd.f32 %v81, %v127
    %v129 = vpop.f32.mrf.mxu0
    %v130 = vpop.f32.mrf.mxu0
    %v131 = vpop.f32.mrf.mxu0
    %132 = vdwg.mxu0
    %v133 = vmax.f32 %v128, 0.0
    %v134 = vld [vmem:[%s3] sm:$0xf]
    %v135 = vld [vmem:[%s3 + $0x4] sm:$0xf]
    %v136 = vld [vmem:[%s3 + $0x8] sm:$0xf]
    %v137 = vld [vmem:[%s3 + $0xc] sm:$0xf]
    %v138 = vld [vmem:[%s3 + $0x10] sm:$0xf]
    %v139 = vld [vmem:[%s3 + $0x14] sm:$0xf]
    %v140 = vld [vmem:[%s3 + $0x18] sm:$0xf]
    %v141 = vld [vmem:[%s3 + $0x1c] sm:$0xf]
    %v142 = vld [vmem:[%s3 + $0x20] sm:$0xf]
    %v143 = vld [vmem:[%s3 + $0x24] sm:$0xf]
    %v144 = vld [vmem:[%s3 + $0x28] sm:$0xf]
    %v145 = vld [vmem:[%s3 + $0x2c] sm:$0xf]
    %v146 = vld [vmem:[%s3 + $0x30] sm:$0xf]
    %v147 = vld [vmem:[%s3 + $0x34] sm:$0xf]
    %v148 = vld [vmem:[%s3 + $0x38] sm:$0xf]
    %v149 = vld [vmem:[%s3 + $0x3c] sm:$0xf]
    %v150 = vld [vmem:[%s4] sm:$0x1]
    %v151 = vpack.c.bf16 %v133, %v133
    %v153 = vlaneseq
    %v154 = vshrl.u32 %v153, 7
    %v155 = vsub.s32 0, %v154
    %v156 = vrot.slane %v150, %v155
    %v174 = vunpack.c.l.b16 %v134
    %v175 = vunpack.c.l.b16 %v135
    %v176 = vunpack.c.l.b16 %v136
    %v177 = vunpack.c.l.b16 %v137
    %v178 = vunpack.c.l.b16 %v138
    %v179 = vunpack.c.l.b16 %v139
    %v180 = vunpack.c.l.b16 %v140
    %v181 = vunpack.c.l.b16 %v141
    %v182 = vunpack.c.l.b16 %v142
    %v183 = vunpack.c.l.b16 %v143
    %v184 = vunpack.c.l.b16 %v144
    %v185 = vunpack.c.l.b16 %v145
    %v186 = vunpack.c.l.b16 %v146
    %v187 = vunpack.c.l.b16 %v147
    %v188 = vunpack.c.l.b16 %v148
    %v189 = vunpack.c.l.b16 %v149
    %v190 = vpack.c.b16 %v175, %v174
    %v191 = vpack.c.b16 %v177, %v176
    %v192 = vpack.c.b16 %v179, %v178
    %v193 = vpack.c.b16 %v181, %v180
    %v194 = vpack.c.b16 %v183, %v182
    %v195 = vpack.c.b16 %v185, %v184
    %v196 = vpack.c.b16 %v187, %v186
    %v197 = vpack.c.b16 %v189, %v188
    %206 = vmatprep.subr.bf16.mxu0 0
    %207 = vmatpush1.bf16.msra.mxu0 %v197
    %208 = vmatprep.subr.bf16.mxu0 0
    %209 = vmatpush1.bf16.msra.mxu0 %v196
    %210 = vmatprep.subr.bf16.mxu0 0
    %211 = vmatpush1.bf16.msra.mxu0 %v195
    %212 = vmatprep.subr.bf16.mxu0 0
    %213 = vmatpush1.bf16.msra.mxu0 %v194
    %214 = vmatprep.subr.bf16.mxu0 0
    %215 = vmatpush1.bf16.msra.mxu0 %v193
    %216 = vmatprep.subr.bf16.mxu0 0
    %217 = vmatpush1.bf16.msra.mxu0 %v192
    %218 = vmatprep.subr.bf16.mxu0 0
    %219 = vmatpush1.bf16.msra.mxu0 %v191
    %220 = vmatprep.subr.bf16.mxu0 0
    %221 = vmatpush1.bf16.msra.mxu0 %v190
    %222 = vmatprep.subr.bf16.mxu0 0
    %223 = vmatpush2.bf16.msra.mxu0 0
    %224 = vmatprep.subr.bf16.mxu0 0
    %225 = vmatpush2.bf16.msra.mxu0 0
    %226 = vmatprep.subr.bf16.mxu0 0
    %227 = vmatpush2.bf16.msra.mxu0 0
    %228 = vmatprep.subr.bf16.mxu0 0
    %229 = vmatpush2.bf16.msra.mxu0 0
    %230 = vmatprep.subr.bf16.mxu0 0
    %231 = vmatpush2.bf16.msra.mxu0 0
    %232 = vmatprep.subr.bf16.mxu0 0
    %233 = vmatpush2.bf16.msra.mxu0 0
    %234 = vmatprep.subr.bf16.mxu0 0
    %235 = vmatpush2.bf16.msra.mxu0 0
    %236 = vmatprep.subr.bf16.mxu0 0
    %237 = vmatpush2.bf16.msra.mxu0 0
    %238 = vmatprep.mubr.bf16.mxu0 0
    %239 = vmatmul.mubr.bf16.gmra.mxu0 %v151
    %v240 = vpop.f32.mrf.mxu0
    %v241 = vadd.f32 %v156, %v240
    %v242 = vpop.f32.mrf.mxu0
    %v243 = vpop.f32.mrf.mxu0
    %v244 = vpop.f32.mrf.mxu0
    %245 = vdwg.mxu0
    %v246 = vmax.f32 %v241, 0.0
    %v247 = vld [vmem:[#allocation6] sm:$0xf]
    %v248 = vld [vmem:[#allocation6 + $0x4] sm:$0xf]
    %v249 = vld [vmem:[#allocation6 + $0x8] sm:$0xf]
    %v250 = vld [vmem:[#allocation6 + $0xc] sm:$0xf]
    %v251 = vld [vmem:[#allocation6 + $0x10] sm:$0xf]
    %v252 = vld [vmem:[#allocation6 + $0x14] sm:$0xf]
    %v253 = vld [vmem:[#allocation6 + $0x18] sm:$0xf]
    %v254 = vld [vmem:[#allocation6 + $0x1c] sm:$0xf]
    %v255 = vld [vmem:[#allocation6 + $0x20] sm:$0xf]
    %v256 = vld [vmem:[#allocation6 + $0x24] sm:$0xf]
    %v257 = vld [vmem:[#allocation6 + $0x28] sm:$0xf]
    %v258 = vld [vmem:[#allocation6 + $0x2c] sm:$0xf]
    %v259 = vld [vmem:[#allocation6 + $0x30] sm:$0xf]
    %v260 = vld [vmem:[#allocation6 + $0x34] sm:$0xf]
    %v261 = vld [vmem:[#allocation6 + $0x38] sm:$0xf]
    %v262 = vld [vmem:[#allocation6 + $0x3c] sm:$0xf]
    %v263 = vld [vmem:[%s6] sm:$0x1]
    %v264 = vpack.c.bf16 %v246, %v246
    %v266 = vlaneseq
    %v267 = vshrl.u32 %v266, 7
    %v268 = vsub.s32 0, %v267
    %v269 = vrot.slane %v263, %v268
    %v287 = vunpack.c.l.b16 %v247
    %v288 = vunpack.c.l.b16 %v248
    %v289 = vunpack.c.l.b16 %v249
    %v290 = vunpack.c.l.b16 %v250
    %v291 = vunpack.c.l.b16 %v251
    %v292 = vunpack.c.l.b16 %v252
    %v293 = vunpack.c.l.b16 %v253
    %v294 = vunpack.c.l.b16 %v254
    %v295 = vunpack.c.l.b16 %v255
    %v296 = vunpack.c.l.b16 %v256
    %v297 = vunpack.c.l.b16 %v257
    %v298 = vunpack.c.l.b16 %v258
    %v299 = vunpack.c.l.b16 %v259
    %v300 = vunpack.c.l.b16 %v260
    %v301 = vunpack.c.l.b16 %v261
    %v302 = vunpack.c.l.b16 %v262
    %v303 = vpack.c.b16 %v288, %v287
    %v304 = vpack.c.b16 %v290, %v289
    %v305 = vpack.c.b16 %v292, %v291
    %v306 = vpack.c.b16 %v294, %v293
    %v307 = vpack.c.b16 %v296, %v295
    %v308 = vpack.c.b16 %v298, %v297
    %v309 = vpack.c.b16 %v300, %v299
    %v310 = vpack.c.b16 %v302, %v301
    %319 = vmatprep.subr.bf16.mxu0 0
    %320 = vmatpush1.bf16.msra.mxu0 %v310
    %321 = vmatprep.subr.bf16.mxu0 0
    %322 = vmatpush1.bf16.msra.mxu0 %v309
    %323 = vmatprep.subr.bf16.mxu0 0
    %324 = vmatpush1.bf16.msra.mxu0 %v308
    %325 = vmatprep.subr.bf16.mxu0 0
    %326 = vmatpush1.bf16.msra.mxu0 %v307
    %327 = vmatprep.subr.bf16.mxu0 0
    %328 = vmatpush1.bf16.msra.mxu0 %v306
    %329 = vmatprep.subr.bf16.mxu0 0
    %330 = vmatpush1.bf16.msra.mxu0 %v305
    %331 = vmatprep.subr.bf16.mxu0 0
    %332 = vmatpush1.bf16.msra.mxu0 %v304
    %333 = vmatprep.subr.bf16.mxu0 0
    %334 = vmatpush1.bf16.msra.mxu0 %v303
    %335 = vmatprep.subr.bf16.mxu0 0
    %336 = vmatpush2.bf16.msra.mxu0 0
    %337 = vmatprep.subr.bf16.mxu0 0
    %338 = vmatpush2.bf16.msra.mxu0 0
    %339 = vmatprep.subr.bf16.mxu0 0
    %340 = vmatpush2.bf16.msra.mxu0 0
    %341 = vmatprep.subr.bf16.mxu0 0
    %342 = vmatpush2.bf16.msra.mxu0 0
    %343 = vmatprep.subr.bf16.mxu0 0
    %344 = vmatpush2.bf16.msra.mxu0 0
    %345 = vmatprep.subr.bf16.mxu0 0
    %346 = vmatpush2.bf16.msra.mxu0 0
    %347 = vmatprep.subr.bf16.mxu0 0
    %348 = vmatpush2.bf16.msra.mxu0 0
    %349 = vmatprep.subr.bf16.mxu0 0
    %350 = vmatpush2.bf16.msra.mxu0 0
    %351 = vmatprep.mubr.bf16.mxu0 0
    %352 = vmatmul.mubr.bf16.gmra.mxu0 %v264
    %v353 = vpop.f32.mrf.mxu0
    %v354 = vadd.f32 %v269, %v353
    %v355 = vpop.f32.mrf.mxu0
    %v356 = vpop.f32.mrf.mxu0
    %v357 = vpop.f32.mrf.mxu0
    %358 = vdwg.mxu0
    %v359 = vmax.f32 %v354, 0.0
    %v360 = vld [vmem:[%s7] sm:$0xf]
    %v361 = vld [vmem:[%s7 + $0x4] sm:$0xf]
    %v362 = vld [vmem:[%s7 + $0x8] sm:$0xf]
    %v363 = vld [vmem:[%s7 + $0xc] sm:$0xf]
    %v364 = vld [vmem:[%s7 + $0x10] sm:$0xf]
    %v365 = vld [vmem:[%s7 + $0x14] sm:$0xf]
    %v366 = vld [vmem:[%s7 + $0x18] sm:$0xf]
    %v367 = vld [vmem:[%s7 + $0x1c] sm:$0xf]
    %v368 = vld [vmem:[%s7 + $0x20] sm:$0xf]
    %v369 = vld [vmem:[%s7 + $0x24] sm:$0xf]
    %v370 = vld [vmem:[%s7 + $0x28] sm:$0xf]
    %v371 = vld [vmem:[%s7 + $0x2c] sm:$0xf]
    %v372 = vld [vmem:[%s7 + $0x30] sm:$0xf]
    %v373 = vld [vmem:[%s7 + $0x34] sm:$0xf]
    %v374 = vld [vmem:[%s7 + $0x38] sm:$0xf]
    %v375 = vld [vmem:[%s7 + $0x3c] sm:$0xf]
    %v376 = vld [vmem:[%s8] sm:$0x1]
    %v377 = vpack.c.bf16 %v359, %v359
    %v379 = vlaneseq
    %v380 = vshrl.u32 %v379, 7
    %v381 = vsub.s32 0, %v380
    %v382 = vrot.slane %v376, %v381
    %v400 = vunpack.c.l.b16 %v360
    %v401 = vunpack.c.l.b16 %v361
    %v402 = vunpack.c.l.b16 %v362
    %v403 = vunpack.c.l.b16 %v363
    %v404 = vunpack.c.l.b16 %v364
    %v405 = vunpack.c.l.b16 %v365
    %v406 = vunpack.c.l.b16 %v366
    %v407 = vunpack.c.l.b16 %v367
    %v408 = vunpack.c.l.b16 %v368
    %v409 = vunpack.c.l.b16 %v369
    %v410 = vunpack.c.l.b16 %v370
    %v411 = vunpack.c.l.b16 %v371
    %v412 = vunpack.c.l.b16 %v372
    %v413 = vunpack.c.l.b16 %v373
    %v414 = vunpack.c.l.b16 %v374
    %v415 = vunpack.c.l.b16 %v375
    %v416 = vpack.c.b16 %v401, %v400
    %v417 = vpack.c.b16 %v403, %v402
    %v418 = vpack.c.b16 %v405, %v404
    %v419 = vpack.c.b16 %v407, %v406
    %v420 = vpack.c.b16 %v409, %v408
    %v421 = vpack.c.b16 %v411, %v410
    %v422 = vpack.c.b16 %v413, %v412
    %v423 = vpack.c.b16 %v415, %v414
    %432 = vmatprep.subr.bf16.mxu0 0
    %433 = vmatpush1.bf16.msra.mxu0 %v423
    %434 = vmatprep.subr.bf16.mxu0 0
    %435 = vmatpush1.bf16.msra.mxu0 %v422
    %436 = vmatprep.subr.bf16.mxu0 0
    %437 = vmatpush1.bf16.msra.mxu0 %v421
    %438 = vmatprep.subr.bf16.mxu0 0
    %439 = vmatpush1.bf16.msra.mxu0 %v420
    %440 = vmatprep.subr.bf16.mxu0 0
    %441 = vmatpush1.bf16.msra.mxu0 %v419
    %442 = vmatprep.subr.bf16.mxu0 0
    %443 = vmatpush1.bf16.msra.mxu0 %v418
    %444 = vmatprep.subr.bf16.mxu0 0
    %445 = vmatpush1.bf16.msra.mxu0 %v417
    %446 = vmatprep.subr.bf16.mxu0 0
    %447 = vmatpush1.bf16.msra.mxu0 %v416
    %448 = vmatprep.subr.bf16.mxu0 0
    %449 = vmatpush2.bf16.msra.mxu0 0
    %450 = vmatprep.subr.bf16.mxu0 0
    %451 = vmatpush2.bf16.msra.mxu0 0
    %452 = vmatprep.subr.bf16.mxu0 0
    %453 = vmatpush2.bf16.msra.mxu0 0
    %454 = vmatprep.subr.bf16.mxu0 0
    %455 = vmatpush2.bf16.msra.mxu0 0
    %456 = vmatprep.subr.bf16.mxu0 0
    %457 = vmatpush2.bf16.msra.mxu0 0
    %458 = vmatprep.subr.bf16.mxu0 0
    %459 = vmatpush2.bf16.msra.mxu0 0
    %460 = vmatprep.subr.bf16.mxu0 0
    %461 = vmatpush2.bf16.msra.mxu0 0
    %462 = vmatprep.subr.bf16.mxu0 0
    %463 = vmatpush2.bf16.msra.mxu0 0
    %464 = vmatprep.mubr.bf16.mxu0 0
    %465 = vmatmul.mubr.bf16.gmra.mxu0 %v377
    %v466 = vpop.f32.mrf.mxu0
    %v467 = vadd.f32 %v382, %v466
    %v468 = vpop.f32.mrf.mxu0
    %v469 = vpop.f32.mrf.mxu0
    %v470 = vpop.f32.mrf.mxu0
    %471 = vdwg.mxu0
    %v472 = vxor.u32 %v467, 2147483648
    %v473 = vmul.f32 %v472, 1.442695
    %v474 = vpow.pop %v473
    %v475 = vadd.f32 %v474, 1.0
    %v476 = vrcp.pop %v475
    %v477 = vmul.f32 1.0, %v476
    %vm478 = vcmask 31744
    %479 = vst.msk [vmem:[%s9] sm:$0xff] %vm478, %v477
    // Predicated region
    $region50: #{tpu_custom_call.1} parent=1 // pred_check
      _
    $region51: #{tpu_custom_call.1} parent=1 // pred_check_branch
      %481 = sbr.rel (0) target = $region53
    $region52: #{tpu_custom_call.1} parent=1 // pred_region
      _
    $region53: #{tpu_custom_call.1} parent=1 // pred_fallthru
      _
    // Predicated region
    $region54: #{tpu_custom_call.1} parent=1 // pred_check
      _
    $region55: #{tpu_custom_call.1} parent=1 // pred_check_branch
      %483 = sbr.rel (0) target = $region57
    $region56: #{tpu_custom_call.1} parent=1 // pred_region
      _
    $region57: #{tpu_custom_call.1} parent=1 // pred_fallthru
      _
    %484 = vsyncpa [#allocation3], 1
    %485 = vsyncpa [#allocation5], 1

</llo_original>
